<compile_context>
chip_gen: v7x
topology: tpu7x:2x2x1
jax: 0.10.0
libtpu: 0.0.40
codegen_flags: <defaults>
</compile_context>

<pallas_src>
import functools

import jax
import jax.numpy as jnp
from jax.experimental import pallas as pl
from jax.experimental.pallas import tpu as pltpu


_LANES = 128   # vreg lane width; last dim of every block
_ROW_MULT = 32  # row-block multiple legal for f32 / bf16 / int8 sublane packing


def _focal_loss_kernel(x_ref, y_ref, o_ref, *, alpha, gamma):
    # Grid = (core, step); the output block is resident across the step axis.
    step = pl.program_id(1)

    @pl.when(step == 0)
    def _():
        o_ref[...] = jnp.zeros_like(o_ref)

    x = x_ref[...].astype(jnp.float32)
    y = y_ref[...].astype(jnp.float32)

    # Numerically-stable BCE-with-logits (same formulation PyTorch uses):
    #   bce = max(x, 0) - x*y + log1p(exp(-|x|))
    bce = jnp.maximum(x, 0.0) - x * y + jnp.log1p(jnp.exp(-jnp.abs(x)))
    pt = jnp.exp(-bce)
    one_minus_pt = 1.0 - pt

    # gamma is a static Python scalar; integer powers unroll to VPU multiplies
    # (gamma-1 of them), avoiding a pow lowering.
    g = float(gamma)
    if g.is_integer() and g >= 1.0:
        w = one_minus_pt
        for _ in range(int(g) - 1):
            w = w * one_minus_pt
    elif g == 0.0:
        w = jnp.ones_like(one_minus_pt)
    else:
        w = one_minus_pt ** g

    focal = (alpha * w) * bce  # padded elements contribute exactly 0 (see wrapper)

    # Sublane-group partial sum into the resident (8, 128) accumulator block.
    # reshape (tm,128) -> (tm//8, 8, 128) groups whole vregs (no relayout);
    # the axis-0 sum is plain VPU adds, no cross-lane XLU work per step.
    tm = focal.shape[0]
    o_ref[...] += jnp.sum(focal.reshape(tm // 8, 8, _LANES), axis=0)


def focal_loss_pallas(inputs, labels, *, alpha=2.0, gamma=2.0, block_rows=2048):
    """Pallas forward of FocalLoss: returns a scalar jnp.float32 loss."""
    assert inputs.shape == labels.shape, (inputs.shape, labels.shape)
    n = int(inputs.size)
    assert n > 0
    assert n < 2**31, "int sizes assume < 2^31 elements"

    # Lane-dense (rows, 128) layout, row axis tiled by tm (multiple of 32).
    rows = pl.cdiv(n, _LANES)
    tm = min(int(block_rows), ((rows + _ROW_MULT - 1) // _ROW_MULT) * _ROW_MULT)
    tm = ((tm + _ROW_MULT - 1) // _ROW_MULT) * _ROW_MULT
    blocks = pl.cdiv(rows, tm)

    # Split the row blocks across two TensorCores (v7x); harmless on 1-TC chips.
    num_cores = 2 if blocks >= 2 else 1
    blocks_padded = ((blocks + num_cores - 1) // num_cores) * num_cores
    steps = blocks_padded // num_cores
    rows_padded = blocks_padded * tm
    total = rows_padded * _LANES

    x = inputs.reshape(-1)
    y = labels.reshape(-1)
    pad = total - n
    if pad:
        # Padding sentinel: logits=-1e4, labels=0  =>  bce=0, pt=1, focal=0,
        # so padded elements contribute exactly zero without any in-kernel mask.
        x = jnp.pad(x, (0, pad), constant_values=-1e4)
        y = jnp.pad(y, (0, pad), constant_values=0)
    x = x.reshape(rows_padded, _LANES)
    y = y.reshape(rows_padded, _LANES)

    kernel = functools.partial(
        _focal_loss_kernel, alpha=float(alpha), gamma=float(gamma)
    )

    partials = pl.pallas_call(
        kernel,
        out_shape=jax.ShapeDtypeStruct((num_cores * 8, _LANES), jnp.float32),
        grid=(num_cores, steps),
        in_specs=[
            pl.BlockSpec((tm, _LANES), lambda c, i: (c * steps + i, 0)),
            pl.BlockSpec((tm, _LANES), lambda c, i: (c * steps + i, 0)),
        ],
        # Output block index depends only on the core axis => resident
        # accumulator across the step (reduction) axis, one per core.
        out_specs=pl.BlockSpec((8, _LANES), lambda c, i: (c, 0)),
        compiler_params=pltpu.CompilerParams(
            dimension_semantics=("parallel", "arbitrary"),
        ),
    )(x, y)

    # Tiny finalize on the (num_cores*8, 128) partials: cross-lane sum + mean.
    return jnp.sum(partials) / n


class FocalLossPallas:
    """Port of FocalLoss(nn.Module): __call__(inputs, labels) -> scalar loss."""

    def __init__(self, alpha=2, gamma=2):
        self.alpha = alpha
        self.gamma = gamma

    def __call__(self, inputs, labels):
        return focal_loss_pallas(inputs, labels, alpha=self.alpha, gamma=self.gamma)


def _focal_loss_ref(inputs, labels, alpha=2.0, gamma=2.0):
    x = inputs.astype(jnp.float32)
    y = labels.astype(jnp.float32)
    bce = jnp.maximum(x, 0.0) - x * y + jnp.log1p(jnp.exp(-jnp.abs(x)))
    pt = jnp.exp(-bce)
    return jnp.mean(alpha * (1.0 - pt) ** gamma * bce)


if __name__ == "__main__":
    key = jax.random.PRNGKey(0)
    k_logits, k_labels, k_logits2, k_labels2 = jax.random.split(key, 4)

    loss_fn = FocalLossPallas(alpha=2, gamma=2)

    # Small shapes implied by the module's use: 11-way multi-label logits.
    B, C = 16, 11
    logits = jax.random.normal(k_logits, (B, C), jnp.float32)
    labels = jax.random.bernoulli(k_labels, 0.3, (B, C)).astype(jnp.float32)

    loss = loss_fn(logits, labels)
    jax.block_until_ready(loss)
    ref = _focal_loss_ref(logits, labels, 2.0, 2.0)
    assert loss.shape == ()
    assert jnp.allclose(loss, ref, rtol=1e-5, atol=1e-6), (float(loss), float(ref))

    # Second case: bf16 inputs (native-dtype streaming), multi-block grid with
    # padding and the two-core parallel axis.
    B2, C2 = 2048, 11
    logits2 = jax.random.normal(k_logits2, (B2, C2), jnp.float32).astype(jnp.bfloat16)
    labels2 = jax.random.bernoulli(k_labels2, 0.3, (B2, C2)).astype(jnp.bfloat16)
    loss2 = focal_loss_pallas(logits2, labels2, alpha=2.0, gamma=2.0, block_rows=64)
    jax.block_until_ready(loss2)
    ref2 = _focal_loss_ref(logits2, labels2, 2.0, 2.0)
    assert jnp.allclose(loss2, ref2, rtol=1e-4, atol=1e-6), (float(loss2), float(ref2))

    print("KERNEL_OK")
</pallas_src>

<mosaic_0001>
module attributes {stable_mosaic.version = 11 : i64} {
  func.func @_focal_loss_kernel(%arg0: i32, %arg1: i32, %arg2: memref<32x128xf32, #tpu.memory_space<vmem>>, %arg3: memref<32x128xf32, #tpu.memory_space<vmem>>, %arg4: memref<8x128xf32, #tpu.memory_space<vmem>>) attributes {dimension_semantics = [#tpu.dimension_semantics<parallel>, #tpu.dimension_semantics<arbitrary>], iteration_bounds = array<i64: 1, 1>, scalar_prefetch = 0 : i64, scratch_operands = 0 : i64, tpu.core_type = #tpu.core_type<tc>, window_params = [{transform_indices = @transform_0, window_bounds = array<i64: 32, 128>}, {transform_indices = @transform_1, window_bounds = array<i64: 32, 128>}, {transform_indices = @transform_2, window_bounds = array<i64: 8, 128>}]} {
    %c0_i32 = arith.constant 0 : i32
    %0 = arith.cmpi eq, %arg1, %c0_i32 : i32
    %1 = arith.extui %0 : i1 to i32
    %c0_i32_0 = arith.constant 0 : i32
    %2 = arith.cmpi ne, %1, %c0_i32_0 : i32
    scf.if %2 {
      %cst_13 = arith.constant 0.000000e+00 : f32
      %29 = vector.broadcast %cst_13 : f32 to vector<8x128xf32>
      %c0_14 = arith.constant 0 : index
      %c0_15 = arith.constant 0 : index
      %30 = vector.load %arg4[%c0_14, %c0_15] : memref<8x128xf32, #tpu.memory_space<vmem>>, vector<8x128xf32>
      tpu.vector_store %arg4[%c0_14, %c0_15], %29 {strides = array<i32>} : memref<8x128xf32, #tpu.memory_space<vmem>>, vector<8x128xf32>,
    } else {
    }
    %c0 = arith.constant 0 : index
    %c0_1 = arith.constant 0 : index
    %3 = vector.load %arg2[%c0, %c0_1] : memref<32x128xf32, #tpu.memory_space<vmem>>, vector<32x128xf32>
    %c0_2 = arith.constant 0 : index
    %c0_3 = arith.constant 0 : index
    %4 = vector.load %arg3[%c0_2, %c0_3] : memref<32x128xf32, #tpu.memory_space<vmem>>, vector<32x128xf32>
    %cst = arith.constant 0.000000e+00 : f32
    %5 = vector.broadcast %cst : f32 to vector<32x128xf32>
    %6 = arith.maximumf %3, %5 : vector<32x128xf32>
    %7 = arith.mulf %3, %4 : vector<32x128xf32>
    %8 = arith.subf %6, %7 : vector<32x128xf32>
    %9 = math.absf %3 : vector<32x128xf32>
    %cst_4 = arith.constant 0.000000e+00 : f32
    %10 = vector.broadcast %cst_4 : f32 to vector<32x128xf32>
    %11 = arith.subf %10, %9 : vector<32x128xf32>
    %12 = math.exp %11 : vector<32x128xf32>
    %13 = math.log1p %12 : vector<32x128xf32>
    %14 = arith.addf %8, %13 : vector<32x128xf32>
    %cst_5 = arith.constant 0.000000e+00 : f32
    %15 = vector.broadcast %cst_5 : f32 to vector<32x128xf32>
    %16 = arith.subf %15, %14 : vector<32x128xf32>
    %17 = math.exp %16 : vector<32x128xf32>
    %cst_6 = arith.constant 1.000000e+00 : f32
    %18 = vector.broadcast %cst_6 : f32 to vector<32x128xf32>
    %19 = arith.subf %18, %17 : vector<32x128xf32>
    %20 = arith.mulf %19, %19 : vector<32x128xf32>
    %cst_7 = arith.constant 2.000000e+00 : f32
    %21 = vector.broadcast %cst_7 : f32 to vector<32x128xf32>
    %22 = arith.mulf %21, %20 : vector<32x128xf32>
    %23 = arith.mulf %22, %14 : vector<32x128xf32>
    %c0_8 = arith.constant 0 : index
    %c0_9 = arith.constant 0 : index
    %24 = vector.load %arg4[%c0_8, %c0_9] : memref<8x128xf32, #tpu.memory_space<vmem>>, vector<8x128xf32>
    %25 = vector.shape_cast %23 : vector<32x128xf32> to vector<4x8x128xf32>
    %cst_10 = arith.constant dense<0.000000e+00> : vector<8x128xf32>
    %26 = vector.multi_reduction <add>, %25, %cst_10 [0] : vector<4x8x128xf32> to vector<8x128xf32>
    %27 = arith.addf %24, %26 : vector<8x128xf32>
    %c0_11 = arith.constant 0 : index
    %c0_12 = arith.constant 0 : index
    %28 = vector.load %arg4[%c0_11, %c0_12] : memref<8x128xf32, #tpu.memory_space<vmem>>, vector<8x128xf32>
    tpu.vector_store %arg4[%c0_11, %c0_12], %27 {strides = array<i32>} : memref<8x128xf32, #tpu.memory_space<vmem>>, vector<8x128xf32>,
    return
  }
  func.func @transform_0(%arg0: i32, %arg1: i32) -> (i32, i32) {
    %c1_i32 = arith.constant 1 : i32
    %0 = arith.muli %arg0, %c1_i32 : i32
    %1 = arith.addi %0, %arg1 : i32
    %c0_i32 = arith.constant 0 : i32
    %c0_i32_0 = arith.constant 0 : i32
    return %1, %c0_i32 : i32, i32
  }
  func.func @transform_1(%arg0: i32, %arg1: i32) -> (i32, i32) {
    %c1_i32 = arith.constant 1 : i32
    %0 = arith.muli %arg0, %c1_i32 : i32
    %1 = arith.addi %0, %arg1 : i32
    %c0_i32 = arith.constant 0 : i32
    %c0_i32_0 = arith.constant 0 : i32
    return %1, %c0_i32 : i32, i32
  }
  func.func @transform_2(%arg0: i32, %arg1: i32) -> (i32, i32) {
    %c0_i32 = arith.constant 0 : i32
    %c0_i32_0 = arith.constant 0 : i32
    return %arg0, %c0_i32 : i32, i32
  }
}

</mosaic_0001>

<llo_original>
// kernel: tpu_custom_call.1
$region0: #{tpu_custom_call.1}
  #allocation0 [shape = 'u32[]', space=smem, size = 0x4, offset = 0x4, fixed_abs, tag = 'smem constant byte address 0x4 - core index']
  #allocation1 [shape = 'u32[144,128]{1,0:T(1,128)}', space=vmem, size = 0x12000, scoped, tag = 'internal scratch']
  %s0 = inlined_call_operand.hbm [shape: f32[32,128], index: 0, kind: input, shape index: {}]
  %s1 = inlined_call_operand.hbm [shape: f32[32,128], index: 1, kind: input, shape index: {}]
  %s2 = inlined_call_operand.hbm [shape: f32[8,128], index: 2, kind: output, shape index: {}]
  %s3 = sld [smem:[#allocation0]]
  $region30: #{tpu_custom_call.1} parent=0
    _
  %s5 = ssub.s32 1, %s3
  %s6 = scalar_select 0, %s5, %s3
  $region1: #{tpu_custom_call.1} parent=0
    #allocation2 [shape = 'u8[16384]{0}', space=vmem, size = 0x4000, scoped, tag = 'input window, operand 0, single buffered']
    #allocation3 [shape = 's32[1]{0}', space=sflag, size = 0x4, scoped, tag = 'scoped memory for tpu_custom_call.1']
    #allocation4 [shape = 's32[1]{0}', space=sflag, size = 0x4, scoped, tag = 'scoped memory for tpu_custom_call.1']
    #allocation5 [shape = 'u8[16384]{0}', space=vmem, size = 0x4000, scoped, tag = 'input window, operand 1, single buffered']
    #allocation6 [shape = 's32[1]{0}', space=sflag, size = 0x4, scoped, tag = 'scoped memory for tpu_custom_call.1']
    #allocation7 [shape = 'u8[4096]{0}', space=vmem, size = 0x1000, scoped, tag = 'output window, operand 0, single buffered']
    %7 = vsyncpa [#allocation3], 0
    %8 = vsyncpa [#allocation6], 0
    %9 = vsyncpa [#allocation4], 0
    // Predicated region
    $region2: #{tpu_custom_call.1} parent=1 // pred_check
      _
    $region3: #{tpu_custom_call.1} parent=1 // pred_check_branch
      %11 = sbr.rel (0) target = $region5
    $region4: #{tpu_custom_call.1} parent=1 // pred_region
      %s12 = sadd.s32 0, 0
      %s13 = smul.u32 4, %s12
      %s15 = ssub.s32 512, 512
      %16 = vsyncadd [#allocation3], %s15
      %s17 = smul.addr %s13, 128
      %s18 = scalar_lea.hbm %s0, %s17
      %s19 = sshll.u32 [#allocation2], 4
      %s20 = int_to_ptr.vmem [resolvable:$true] %s19
      %25 = dma.hbm_to_vmem [thread:$0]  %s18, 512, %s20, [#allocation3], 128, 128, 8
    $region5: #{tpu_custom_call.1} parent=1 // pred_fallthru
      _
    // Predicated region
    $region6: #{tpu_custom_call.1} parent=1 // pred_check
      _
    $region7: #{tpu_custom_call.1} parent=1 // pred_check_branch
      %27 = sbr.rel (0) target = $region9
    $region8: #{tpu_custom_call.1} parent=1 // pred_region
      %s28 = sadd.s32 0, 0
      %s29 = smul.u32 4, %s28
      %s31 = ssub.s32 512, 512
      %32 = vsyncadd [#allocation6], %s31
      %s33 = smul.addr %s29, 128
      %s34 = scalar_lea.hbm %s1, %s33
      %s35 = sshll.u32 [#allocation5], 4
      %s36 = int_to_ptr.vmem [resolvable:$true] %s35
      %41 = dma.hbm_to_vmem [thread:$0]  %s34, 512, %s36, [#allocation6], 128, 128, 8
    $region9: #{tpu_custom_call.1} parent=1 // pred_fallthru
      _
    // Predicated region
    $region10: #{tpu_custom_call.1} parent=1 // pred_check
      _
    $region11: #{tpu_custom_call.1} parent=1 // pred_check_branch
      %43 = sbr.rel (0) target = $region13
    $region12: #{tpu_custom_call.1} parent=1 // pred_region
      %44 = dma.done [#allocation3], 512
    $region13: #{tpu_custom_call.1} parent=1 // pred_fallthru
      _
    // Predicated region
    $region14: #{tpu_custom_call.1} parent=1 // pred_check
      _
    $region15: #{tpu_custom_call.1} parent=1 // pred_check_branch
      %46 = sbr.rel (0) target = $region17
    $region16: #{tpu_custom_call.1} parent=1 // pred_region
      %47 = dma.done [#allocation6], 512
    $region17: #{tpu_custom_call.1} parent=1 // pred_fallthru
      _
    %s48 = sadd.s32 0, 0
    %s49 = smul.u32 4, %s48
    %s50 = sadd.s32 0, 0
    %s51 = smul.u32 4, %s50
    %p52 = scmp.eq.s32.totalorder 0, 0
    // Predicated region
    $region18: #{tpu_custom_call.1} parent=1 // pred_check
      %p53 = pneg %p52
    $region19: #{tpu_custom_call.1} parent=1 // pred_check_branch
      %55 = sbr.rel (%p53) target = $region21
    $region20: #{tpu_custom_call.1} parent=1 // pred_region
      %56 = vst [vmem:[#allocation7] sm:$0xff] 0.0
    $region21: #{tpu_custom_call.1} parent=1 // pred_fallthru
      _
    %v57 = vld [vmem:[#allocation2] sm:$0xff]
    %v58 = vld [vmem:[#allocation2 + $0x8] sm:$0xff]
    %v59 = vld [vmem:[#allocation2 + $0x10] sm:$0xff]
    %v60 = vld [vmem:[#allocation2 + $0x18] sm:$0xff]
    %v61 = vld [vmem:[#allocation5] sm:$0xff]
    %v62 = vld [vmem:[#allocation5 + $0x8] sm:$0xff]
    %v63 = vld [vmem:[#allocation5 + $0x10] sm:$0xff]
    %v64 = vld [vmem:[#allocation5 + $0x18] sm:$0xff]
    %v65 = vmax.f32 %v57, 0.0
    %v66 = vmax.f32 %v58, 0.0
    %v67 = vmax.f32 %v59, 0.0
    %v68 = vmax.f32 %v60, 0.0
    %v69 = vmul.f32 %v57, %v61
    %v70 = vmul.f32 %v58, %v62
    %v71 = vmul.f32 %v59, %v63
    %v72 = vmul.f32 %v60, %v64
    %v73 = vsub.f32 %v65, %v69
    %v74 = vsub.f32 %v66, %v70
    %v75 = vsub.f32 %v67, %v71
    %v76 = vsub.f32 %v68, %v72
    %v77 = vand.u32 2147483647, %v57
    %v78 = vand.u32 2147483647, %v58
    %v79 = vand.u32 2147483647, %v59
    %v80 = vand.u32 2147483647, %v60
    %v81 = vsub.f32 0.0, %v77
    %v82 = vsub.f32 0.0, %v78
    %v83 = vsub.f32 0.0, %v79
    %v84 = vsub.f32 0.0, %v80
    %v85 = vmul.f32 %v81, 1.442695
    %v86 = vpow.pop %v85
    %v87 = vmul.f32 %v82, 1.442695
    %v88 = vpow.pop %v87
    %v89 = vmul.f32 %v83, 1.442695
    %v90 = vpow.pop %v89
    %v91 = vmul.f32 %v84, 1.442695
    %v92 = vpow.pop %v91
    %v93 = vadd.f32 %v86, 1.0
    %v94 = vlog2.pop %v93
    %v95 = vmul.f32 %v94, 0.6931472
    %v96 = vmul.f32 -0.5, %v86
    %v97 = vadd.f32 %v96, 1.0
    %v98 = vmul.f32 %v97, %v86
    %v99 = vand.u32 2147483647, %v86
    %vm100 = vcmp.lt.f32.partialorder %v99, 0.0004427343
    %v101 = vsel %vm100, %v98, %v95
    %v102 = vadd.f32 %v88, 1.0
    %v103 = vlog2.pop %v102
    %v104 = vmul.f32 %v103, 0.6931472
    %v105 = vmul.f32 -0.5, %v88
    %v106 = vadd.f32 %v105, 1.0
    %v107 = vmul.f32 %v106, %v88
    %v108 = vand.u32 2147483647, %v88
    %vm109 = vcmp.lt.f32.partialorder %v108, 0.0004427343
    %v110 = vsel %vm109, %v107, %v104
    %v111 = vadd.f32 %v90, 1.0
    %v112 = vlog2.pop %v111
    %v113 = vmul.f32 %v112, 0.6931472
    %v114 = vmul.f32 -0.5, %v90
    %v115 = vadd.f32 %v114, 1.0
    %v116 = vmul.f32 %v115, %v90
    %v117 = vand.u32 2147483647, %v90
    %vm118 = vcmp.lt.f32.partialorder %v117, 0.0004427343
    %v119 = vsel %vm118, %v116, %v113
    %v120 = vadd.f32 %v92, 1.0
    %v121 = vlog2.pop %v120
    %v122 = vmul.f32 %v121, 0.6931472
    %v123 = vmul.f32 -0.5, %v92
    %v124 = vadd.f32 %v123, 1.0
    %v125 = vmul.f32 %v124, %v92
    %v126 = vand.u32 2147483647, %v92
    %vm127 = vcmp.lt.f32.partialorder %v126, 0.0004427343
    %v128 = vsel %vm127, %v125, %v122
    %v129 = vadd.f32 %v73, %v101
    %v130 = vadd.f32 %v74, %v110
    %v131 = vadd.f32 %v75, %v119
    %v132 = vadd.f32 %v76, %v128
    %v133 = vsub.f32 0.0, %v129
    %v134 = vsub.f32 0.0, %v130
    %v135 = vsub.f32 0.0, %v131
    %v136 = vsub.f32 0.0, %v132
    %v137 = vmul.f32 %v133, 1.442695
    %v138 = vpow.pop %v137
    %v139 = vmul.f32 %v134, 1.442695
    %v140 = vpow.pop %v139
    %v141 = vmul.f32 %v135, 1.442695
    %v142 = vpow.pop %v141
    %v143 = vmul.f32 %v136, 1.442695
    %v144 = vpow.pop %v143
    %v145 = vsub.f32 1.0, %v138
    %v146 = vsub.f32 1.0, %v140
    %v147 = vsub.f32 1.0, %v142
    %v148 = vsub.f32 1.0, %v144
    %v149 = vmul.f32 %v145, %v145
    %v150 = vmul.f32 %v146, %v146
    %v151 = vmul.f32 %v147, %v147
    %v152 = vmul.f32 %v148, %v148
    %v153 = vmul.f32 %v149, 2.0
    %v154 = vmul.f32 %v150, 2.0
    %v155 = vmul.f32 %v151, 2.0
    %v156 = vmul.f32 %v152, 2.0
    %v157 = vmul.f32 %v153, %v129
    %v158 = vmul.f32 %v154, %v130
    %v159 = vmul.f32 %v155, %v131
    %v160 = vmul.f32 %v156, %v132
    %v161 = vld [vmem:[#allocation7] sm:$0xff]
    %v162 = vadd.f32 %v157, %v158
    %v163 = vadd.f32 %v162, %v159
    %v164 = vadd.f32 %v163, %v160
    %v165 = vadd.f32 %v161, %v164
    %166 = vst [vmem:[#allocation7] sm:$0xff] %v165
    // Predicated region
    $region22: #{tpu_custom_call.1} parent=1 // pred_check
      _
    $region23: #{tpu_custom_call.1} parent=1 // pred_check_branch
      %168 = sbr.rel (0) target = $region25
    $region24: #{tpu_custom_call.1} parent=1 // pred_region
      %s170 = ssub.s32 128, 128
      %171 = vsyncadd [#allocation4], %s170
      %s173 = sshll.u32 [#allocation7], 4
      %s174 = int_to_ptr.vmem [resolvable:$true] %s173
      %176 = dma.vmem_to_hbm [thread:$0]  %s174, 128, %s2, [#allocation4]
    $region25: #{tpu_custom_call.1} parent=1 // pred_fallthru
      _
    // Predicated region
    $region26: #{tpu_custom_call.1} parent=1 // pred_check
      _
    $region27: #{tpu_custom_call.1} parent=1 // pred_check_branch
      %178 = sbr.rel (0) target = $region29
    $region28: #{tpu_custom_call.1} parent=1 // pred_region
      %179 = dma.done [#allocation4], 128
    $region29: #{tpu_custom_call.1} parent=1 // pred_fallthru
      _
    %180 = vsyncpa [#allocation3], 1
    %181 = vsyncpa [#allocation6], 1
    %182 = vsyncpa [#allocation4], 1

</llo_original>
